<compile_context>
chip_gen: v7x
topology: tpu7x:2x2x1
jax: 0.10.0
libtpu: 0.0.40
codegen_flags: <defaults>
</compile_context>

<pallas_src>
import functools

import jax
import jax.numpy as jnp
from jax import lax
from jax.experimental import pallas as pl
from jax.experimental.pallas import tpu as pltpu

_LANES = 128
_SMOOTH = 1e-5


def _dice_partial_kernel(score_ref, tgt_ref, inter_ref, z_ref, y_ref, *,
                         n_classes, tile_s, n_inner, s_rows,
                         use_softmax, mask_rows, mask_lanes):
    """Accumulate per-class partial sums for one (batch, pixel-tile) block.

    score_ref : (1, C, TS, 128)  model scores (bf16/f32; cast per-class slab)
    tgt_ref   : (1, TS, 128)     int8/int32 labels (-1 on lane-padded pixels)
    inter_ref / z_ref / y_ref : (1, 1, C, 128) f32 per-class, per-lane partial
        sums, resident across the inner (reduction) grid axis.
    """
    i = pl.program_id(2)

    @pl.when(i == 0)
    def _init():
        inter_ref[...] = jnp.zeros_like(inter_ref)
        z_ref[...] = jnp.zeros_like(z_ref)
        y_ref[...] = jnp.zeros_like(y_ref)

    tgt = tgt_ref[0].astype(jnp.int32)                        # (TS, 128)

    # Validity mask — only materialized when padding can actually occur.
    valid = None
    if mask_rows:
        # Ragged last pixel tile: sublane rows past the true extent are garbage.
        t_global = pl.program_id(1) * n_inner + i
        rows = lax.broadcasted_iota(jnp.int32, (tile_s, _LANES), 0)
        valid = rows < (s_rows - t_global * tile_s)
    if mask_lanes:
        # Lane remainder was padded with label -1 (and score 0) in the wrapper.
        lane_ok = tgt >= 0
        valid = lane_ok if valid is None else jnp.logical_and(valid, lane_ok)

    if use_softmax:
        # Softmax over the class (leading, non-vreg) axis; only `e` is a full
        # (C,TS,128) live temporary; one divide per pixel, C multiplies.
        s = score_ref[0].astype(jnp.float32)                  # (C, TS, 128)
        m = jnp.max(s, axis=0)                                # (TS, 128)
        e = jnp.exp(s - m[None])                              # (C, TS, 128)
        inv = 1.0 / jnp.sum(e, axis=0)                        # (TS, 128)

        def get_class(c):
            return e[c] * inv
    else:

        def get_class(c):
            return score_ref[0, c].astype(jnp.float32)        # (TS, 128) slab

    inter_rows, z_rows, y_rows = [], [], []
    for c in range(n_classes):                                # static unroll
        s_c = get_class(c)                                    # (TS, 128) f32
        oh_c = tgt == c                                       # (TS, 128) bool
        if valid is not None:
            # where(), not multiply: out-of-bounds reads may be NaN/Inf.
            s_c = jnp.where(valid, s_c, 0.0)
            oh_c = jnp.logical_and(oh_c, valid)
        # Sublane-axis reductions only; lane/batch sums happen in the epilogue.
        inter_rows.append(jnp.sum(jnp.where(oh_c, s_c, 0.0),
                                  axis=0, keepdims=True))     # (1, 128)
        z_rows.append(jnp.sum(s_c * s_c, axis=0, keepdims=True))
        y_rows.append(jnp.sum(oh_c.astype(jnp.float32), axis=0, keepdims=True))

    inter_ref[...] += jnp.concatenate(inter_rows, axis=0)[None, None]
    z_ref[...] += jnp.concatenate(z_rows, axis=0)[None, None]
    y_ref[...] += jnp.concatenate(y_rows, axis=0)[None, None]


def _pick_tile(s_rows, n_classes, itemsize, max_block_bytes):
    """Largest sublane tile (multiple of 32, for int8 target tiling) whose
    score block fits the per-block byte budget; full extent if it already fits."""
    cap = max_block_bytes // (n_classes * _LANES * itemsize)
    cap = max(32, (cap // 32) * 32)
    return s_rows if s_rows <= cap else cap


def dice_loss(inputs, target, n_classes, weight=None, softmax=False,
              max_block_bytes=2 * 1024 * 1024):
    """Pallas DiceLoss forward. inputs: (N, C, H, W) scores; target: (N, H, W)."""
    N, C, H, W = inputs.shape
    assert C == n_classes, f"predict C={C} & n_classes={n_classes} do not match"
    P = H * W

    # Lane-dense layout: split the pixel axis into (sublane, 128-lane) rows.
    S = pl.cdiv(P, _LANES)
    lane_pad = S * _LANES - P

    # Labels fit in int8 for <=127 classes -> 4x less target HBM traffic.
    tgt_dtype = jnp.int8 if n_classes <= 127 else jnp.int32

    score = inputs.reshape(N, C, P)               # free (contiguous) reshape
    tgt = target.reshape(N, P).astype(tgt_dtype)
    if lane_pad:
        # Only copy ever made, and only when P % 128 != 0.
        score = jnp.pad(score, ((0, 0), (0, 0), (0, lane_pad)))
        tgt = jnp.pad(tgt, ((0, 0), (0, lane_pad)), constant_values=-1)
    score = score.reshape(N, C, S, _LANES)
    tgt = tgt.reshape(N, S, _LANES)

    itemsize = jnp.dtype(inputs.dtype).itemsize
    tile_s = _pick_tile(S, C, itemsize, max_block_bytes)
    num_t = pl.cdiv(S, tile_s)

    # Megacore (v7x): add a second parallel axis over pixel tiles when it splits
    # evenly (keeps every block index in-bounds; no-op on 1-TC chips).
    if num_t >= 2 and num_t % 2 == 0:
        n_outer, n_inner = 2, num_t // 2
    else:
        n_outer, n_inner = 1, num_t

    mask_rows = (num_t * tile_s != S)             # ragged last pixel tile
    mask_lanes = bool(lane_pad)

    kernel = functools.partial(
        _dice_partial_kernel,
        n_classes=C, tile_s=tile_s, n_inner=n_inner, s_rows=S,
        use_softmax=bool(softmax), mask_rows=mask_rows, mask_lanes=mask_lanes)

    part_shape = jax.ShapeDtypeStruct((N, n_outer, C, _LANES), jnp.float32)
    part_spec = pl.BlockSpec((1, 1, C, _LANES), lambda g, o, i: (g, o, 0, 0))

    inter_p, z_p, y_p = pl.pallas_call(
        kernel,
        out_shape=(part_shape, part_shape, part_shape),
        grid_spec=pltpu.PrefetchScalarGridSpec(
            num_scalar_prefetch=0,
            grid=(N, n_outer, n_inner),
            in_specs=[
                pl.BlockSpec((1, C, tile_s, _LANES),
                             lambda g, o, i: (g, 0, o * n_inner + i, 0)),
                pl.BlockSpec((1, tile_s, _LANES),
                             lambda g, o, i: (g, o * n_inner + i, 0)),
            ],
            out_specs=[part_spec, part_spec, part_spec],
        ),
        compiler_params=pltpu.CompilerParams(
            dimension_semantics=("parallel", "parallel", "arbitrary")),
    )(score, tgt)

    # Tiny per-class epilogue in JAX (class weights live here).
    if weight is None:
        weight = [1.0] * n_classes
    w = jnp.asarray(weight, dtype=jnp.float32)
    intersect = inter_p.sum(axis=(0, 1, 3))      # (C,)
    z_sum = z_p.sum(axis=(0, 1, 3))
    y_sum = y_p.sum(axis=(0, 1, 3))
    dice = 1.0 - (2.0 * intersect + _SMOOTH) / (z_sum + y_sum + _SMOOTH)
    return jnp.sum(dice * w) / n_classes


def dice_loss_ref(inputs, target, n_classes, weight=None, softmax=False):
    """Pure-JAX reference mirroring the PyTorch module."""
    if softmax:
        inputs = jax.nn.softmax(inputs, axis=1)
    target_oh = jnp.stack([(target == i) for i in range(n_classes)],
                          axis=1).astype(jnp.float32)
    if weight is None:
        weight = [1.0] * n_classes
    loss = 0.0
    for i in range(n_classes):
        s = inputs[:, i].astype(jnp.float32)
        t = target_oh[:, i]
        intersect = jnp.sum(s * t)
        y_sum = jnp.sum(t * t)
        z_sum = jnp.sum(s * s)
        dice = 1.0 - (2.0 * intersect + _SMOOTH) / (z_sum + y_sum + _SMOOTH)
        loss = loss + dice * weight[i]
    return loss / n_classes


if __name__ == "__main__":
    key = jax.random.PRNGKey(0)
    k1, k2, k3, k4 = jax.random.split(key, 4)

    # Case 1/2: small aligned shapes (single full-extent tile, no masking).
    N, C, H, W = 2, 4, 16, 16
    inputs = jax.random.normal(k1, (N, C, H, W), dtype=jnp.float32)
    target = jax.random.randint(k2, (N, H, W), 0, C).astype(jnp.int32)

    loss1 = jax.block_until_ready(dice_loss(inputs, target, n_classes=C))
    ref1 = dice_loss_ref(inputs, target, n_classes=C)

    wts = [0.5, 1.0, 1.5, 2.0]
    loss2 = jax.block_until_ready(
        dice_loss(inputs, target, n_classes=C, weight=wts, softmax=True))
    ref2 = dice_loss_ref(inputs, target, n_classes=C, weight=wts, softmax=True)

    # Case 3: exercise lane padding, ragged-tile row masking, pixel-tile
    # megacore split and int8 targets (tiny block budget forces tiling).
    H3 = W3 = 120                                  # P=14400 -> S=113 (ragged)
    inputs3 = jax.random.normal(k3, (N, C, H3, W3), dtype=jnp.float32)
    target3 = jax.random.randint(k4, (N, H3, W3), 0, C).astype(jnp.int32)
    loss3 = jax.block_until_ready(
        dice_loss(inputs3, target3, n_classes=C, weight=wts, softmax=True,
                  max_block_bytes=64 * 1024))
    ref3 = dice_loss_ref(inputs3, target3, n_classes=C, weight=wts, softmax=True)

    assert jnp.allclose(loss1, ref1, rtol=1e-4, atol=1e-5), (loss1, ref1)
    assert jnp.allclose(loss2, ref2, rtol=1e-4, atol=1e-5), (loss2, ref2)
    assert jnp.allclose(loss3, ref3, rtol=1e-4, atol=1e-5), (loss3, ref3)

    print("KERNEL_OK")
</pallas_src>

<mosaic_0001>
module attributes {stable_mosaic.version = 11 : i64} {
  func.func @_dice_partial_kernel(%arg0: i32, %arg1: i32, %arg2: i32, %arg3: memref<1x4x2x128xf32, #tpu.memory_space<vmem>>, %arg4: memref<1x2x128xi8, #tpu.memory_space<vmem>>, %arg5: memref<1x1x4x128xf32, #tpu.memory_space<vmem>>, %arg6: memref<1x1x4x128xf32, #tpu.memory_space<vmem>>, %arg7: memref<1x1x4x128xf32, #tpu.memory_space<vmem>>) attributes {dimension_semantics = [#tpu.dimension_semantics<parallel>, #tpu.dimension_semantics<parallel>, #tpu.dimension_semantics<arbitrary>], iteration_bounds = array<i64: 2, 1, 1>, scalar_prefetch = 0 : i64, scratch_operands = 0 : i64, tpu.core_type = #tpu.core_type<tc>, window_params = [{transform_indices = @transform_0, window_bounds = array<i64: 1, 4, 2, 128>}, {transform_indices = @transform_1, window_bounds = array<i64: 1, 2, 128>}, {transform_indices = @transform_2, window_bounds = array<i64: 1, 1, 4, 128>}, {transform_indices = @transform_3, window_bounds = array<i64: 1, 1, 4, 128>}, {transform_indices = @transform_4, window_bounds = array<i64: 1, 1, 4, 128>}]} {
    %c0_i32 = arith.constant 0 : i32
    %0 = arith.cmpi eq, %arg2, %c0_i32 : i32
    %1 = arith.extui %0 : i1 to i32
    %c0_i32_0 = arith.constant 0 : i32
    %2 = arith.cmpi ne, %1, %c0_i32_0 : i32
    scf.if %2 {
      %cst_56 = arith.constant 0.000000e+00 : f32
      %81 = vector.broadcast %cst_56 : f32 to vector<1x1x4x128xf32>
      %c0_57 = arith.constant 0 : index
      %c0_58 = arith.constant 0 : index
      %c0_59 = arith.constant 0 : index
      %c0_60 = arith.constant 0 : index
      %82 = vector.load %arg5[%c0_57, %c0_58, %c0_59, %c0_60] : memref<1x1x4x128xf32, #tpu.memory_space<vmem>>, vector<1x1x4x128xf32>
      tpu.vector_store %arg5[%c0_57, %c0_58, %c0_59, %c0_60], %81 {strides = array<i32>} : memref<1x1x4x128xf32, #tpu.memory_space<vmem>>, vector<1x1x4x128xf32>,
      %cst_61 = arith.constant 0.000000e+00 : f32
      %83 = vector.broadcast %cst_61 : f32 to vector<1x1x4x128xf32>
      %c0_62 = arith.constant 0 : index
      %c0_63 = arith.constant 0 : index
      %c0_64 = arith.constant 0 : index
      %c0_65 = arith.constant 0 : index
      %84 = vector.load %arg6[%c0_62, %c0_63, %c0_64, %c0_65] : memref<1x1x4x128xf32, #tpu.memory_space<vmem>>, vector<1x1x4x128xf32>
      tpu.vector_store %arg6[%c0_62, %c0_63, %c0_64, %c0_65], %83 {strides = array<i32>} : memref<1x1x4x128xf32, #tpu.memory_space<vmem>>, vector<1x1x4x128xf32>,
      %cst_66 = arith.constant 0.000000e+00 : f32
      %85 = vector.broadcast %cst_66 : f32 to vector<1x1x4x128xf32>
      %c0_67 = arith.constant 0 : index
      %c0_68 = arith.constant 0 : index
      %c0_69 = arith.constant 0 : index
      %c0_70 = arith.constant 0 : index
      %86 = vector.load %arg7[%c0_67, %c0_68, %c0_69, %c0_70] : memref<1x1x4x128xf32, #tpu.memory_space<vmem>>, vector<1x1x4x128xf32>
      tpu.vector_store %arg7[%c0_67, %c0_68, %c0_69, %c0_70], %85 {strides = array<i32>} : memref<1x1x4x128xf32, #tpu.memory_space<vmem>>, vector<1x1x4x128xf32>,
    } else {
    }
    %c0 = arith.constant 0 : index
    %c0_1 = arith.constant 0 : index
    %c0_2 = arith.constant 0 : index
    %3 = vector.load %arg4[%c0, %c0_1, %c0_2] : memref<1x2x128xi8, #tpu.memory_space<vmem>>, vector<1x2x128xi8>
    %4 = vector.shape_cast %3 : vector<1x2x128xi8> to vector<2x128xi8>
    %5 = arith.extsi %4 : vector<2x128xi8> to vector<2x128xi32>
    %c0_3 = arith.constant 0 : index
    %c0_4 = arith.constant 0 : index
    %c0_5 = arith.constant 0 : index
    %c0_6 = arith.constant 0 : index
    %6 = vector.load %arg3[%c0_3, %c0_4, %c0_5, %c0_6] : memref<1x4x2x128xf32, #tpu.memory_space<vmem>>, vector<1x1x2x128xf32>
    %7 = vector.shape_cast %6 : vector<1x1x2x128xf32> to vector<2x128xf32>
    %c0_i32_7 = arith.constant 0 : i32
    %8 = vector.broadcast %c0_i32_7 : i32 to vector<2x128xi32>
    %9 = arith.cmpi eq, %5, %8 : vector<2x128xi32>
    %cst = arith.constant 0.000000e+00 : f32
    %10 = vector.broadcast %cst : f32 to vector<2x128xf32>
    %11 = arith.select %9, %7, %10 : vector<2x128xi1>, vector<2x128xf32>
    %cst_8 = arith.constant dense<0.000000e+00> : vector<128xf32>
    %12 = vector.multi_reduction <add>, %11, %cst_8 [0] : vector<2x128xf32> to vector<128xf32>
    %13 = vector.shape_cast %12 : vector<128xf32> to vector<1x128xf32>
    %14 = arith.mulf %7, %7 : vector<2x128xf32>
    %cst_9 = arith.constant dense<0.000000e+00> : vector<128xf32>
    %15 = vector.multi_reduction <add>, %14, %cst_9 [0] : vector<2x128xf32> to vector<128xf32>
    %16 = vector.shape_cast %15 : vector<128xf32> to vector<1x128xf32>
    %17 = arith.extui %9 : vector<2x128xi1> to vector<2x128xi32>
    %18 = arith.sitofp %17 : vector<2x128xi32> to vector<2x128xf32>
    %cst_10 = arith.constant dense<0.000000e+00> : vector<128xf32>
    %19 = vector.multi_reduction <add>, %18, %cst_10 [0] : vector<2x128xf32> to vector<128xf32>
    %20 = vector.shape_cast %19 : vector<128xf32> to vector<1x128xf32>
    %c0_11 = arith.constant 0 : index
    %c1 = arith.constant 1 : index
    %c0_12 = arith.constant 0 : index
    %c0_13 = arith.constant 0 : index
    %21 = vector.load %arg3[%c0_11, %c1, %c0_12, %c0_13] : memref<1x4x2x128xf32, #tpu.memory_space<vmem>>, vector<1x1x2x128xf32>
    %22 = vector.shape_cast %21 : vector<1x1x2x128xf32> to vector<2x128xf32>
    %c1_i32 = arith.constant 1 : i32
    %23 = vector.broadcast %c1_i32 : i32 to vector<2x128xi32>
    %24 = arith.cmpi eq, %5, %23 : vector<2x128xi32>
    %cst_14 = arith.constant 0.000000e+00 : f32
    %25 = vector.broadcast %cst_14 : f32 to vector<2x128xf32>
    %26 = arith.select %24, %22, %25 : vector<2x128xi1>, vector<2x128xf32>
    %cst_15 = arith.constant dense<0.000000e+00> : vector<128xf32>
    %27 = vector.multi_reduction <add>, %26, %cst_15 [0] : vector<2x128xf32> to vector<128xf32>
    %28 = vector.shape_cast %27 : vector<128xf32> to vector<1x128xf32>
    %29 = arith.mulf %22, %22 : vector<2x128xf32>
    %cst_16 = arith.constant dense<0.000000e+00> : vector<128xf32>
    %30 = vector.multi_reduction <add>, %29, %cst_16 [0] : vector<2x128xf32> to vector<128xf32>
    %31 = vector.shape_cast %30 : vector<128xf32> to vector<1x128xf32>
    %32 = arith.extui %24 : vector<2x128xi1> to vector<2x128xi32>
    %33 = arith.sitofp %32 : vector<2x128xi32> to vector<2x128xf32>
    %cst_17 = arith.constant dense<0.000000e+00> : vector<128xf32>
    %34 = vector.multi_reduction <add>, %33, %cst_17 [0] : vector<2x128xf32> to vector<128xf32>
    %35 = vector.shape_cast %34 : vector<128xf32> to vector<1x128xf32>
    %c0_18 = arith.constant 0 : index
    %c2 = arith.constant 2 : index
    %c0_19 = arith.constant 0 : index
    %c0_20 = arith.constant 0 : index
    %36 = vector.load %arg3[%c0_18, %c2, %c0_19, %c0_20] : memref<1x4x2x128xf32, #tpu.memory_space<vmem>>, vector<1x1x2x128xf32>
    %37 = vector.shape_cast %36 : vector<1x1x2x128xf32> to vector<2x128xf32>
    %c2_i32 = arith.constant 2 : i32
    %38 = vector.broadcast %c2_i32 : i32 to vector<2x128xi32>
    %39 = arith.cmpi eq, %5, %38 : vector<2x128xi32>
    %cst_21 = arith.constant 0.000000e+00 : f32
    %40 = vector.broadcast %cst_21 : f32 to vector<2x128xf32>
    %41 = arith.select %39, %37, %40 : vector<2x128xi1>, vector<2x128xf32>
    %cst_22 = arith.constant dense<0.000000e+00> : vector<128xf32>
    %42 = vector.multi_reduction <add>, %41, %cst_22 [0] : vector<2x128xf32> to vector<128xf32>
    %43 = vector.shape_cast %42 : vector<128xf32> to vector<1x128xf32>
    %44 = arith.mulf %37, %37 : vector<2x128xf32>
    %cst_23 = arith.constant dense<0.000000e+00> : vector<128xf32>
    %45 = vector.multi_reduction <add>, %44, %cst_23 [0] : vector<2x128xf32> to vector<128xf32>
    %46 = vector.shape_cast %45 : vector<128xf32> to vector<1x128xf32>
    %47 = arith.extui %39 : vector<2x128xi1> to vector<2x128xi32>
    %48 = arith.sitofp %47 : vector<2x128xi32> to vector<2x128xf32>
    %cst_24 = arith.constant dense<0.000000e+00> : vector<128xf32>
    %49 = vector.multi_reduction <add>, %48, %cst_24 [0] : vector<2x128xf32> to vector<128xf32>
    %50 = vector.shape_cast %49 : vector<128xf32> to vector<1x128xf32>
    %c0_25 = arith.constant 0 : index
    %c3 = arith.constant 3 : index
    %c0_26 = arith.constant 0 : index
    %c0_27 = arith.constant 0 : index
    %51 = vector.load %arg3[%c0_25, %c3, %c0_26, %c0_27] : memref<1x4x2x128xf32, #tpu.memory_space<vmem>>, vector<1x1x2x128xf32>
    %52 = vector.shape_cast %51 : vector<1x1x2x128xf32> to vector<2x128xf32>
    %c3_i32 = arith.constant 3 : i32
    %53 = vector.broadcast %c3_i32 : i32 to vector<2x128xi32>
    %54 = arith.cmpi eq, %5, %53 : vector<2x128xi32>
    %cst_28 = arith.constant 0.000000e+00 : f32
    %55 = vector.broadcast %cst_28 : f32 to vector<2x128xf32>
    %56 = arith.select %54, %52, %55 : vector<2x128xi1>, vector<2x128xf32>
    %cst_29 = arith.constant dense<0.000000e+00> : vector<128xf32>
    %57 = vector.multi_reduction <add>, %56, %cst_29 [0] : vector<2x128xf32> to vector<128xf32>
    %58 = vector.shape_cast %57 : vector<128xf32> to vector<1x128xf32>
    %59 = arith.mulf %52, %52 : vector<2x128xf32>
    %cst_30 = arith.constant dense<0.000000e+00> : vector<128xf32>
    %60 = vector.multi_reduction <add>, %59, %cst_30 [0] : vector<2x128xf32> to vector<128xf32>
    %61 = vector.shape_cast %60 : vector<128xf32> to vector<1x128xf32>
    %62 = arith.extui %54 : vector<2x128xi1> to vector<2x128xi32>
    %63 = arith.sitofp %62 : vector<2x128xi32> to vector<2x128xf32>
    %cst_31 = arith.constant dense<0.000000e+00> : vector<128xf32>
    %64 = vector.multi_reduction <add>, %63, %cst_31 [0] : vector<2x128xf32> to vector<128xf32>
    %65 = vector.shape_cast %64 : vector<128xf32> to vector<1x128xf32>
    %c0_32 = arith.constant 0 : index
    %c0_33 = arith.constant 0 : index
    %c0_34 = arith.constant 0 : index
    %c0_35 = arith.constant 0 : index
    %66 = vector.load %arg5[%c0_32, %c0_33, %c0_34, %c0_35] : memref<1x1x4x128xf32, #tpu.memory_space<vmem>>, vector<1x1x4x128xf32>
    %67 = tpu.concatenate %13, %28, %43, %58 in 0 : vector<1x128xf32>, vector<1x128xf32>, vector<1x128xf32>, vector<1x128xf32> -> vector<4x128xf32>
    %68 = vector.shape_cast %67 : vector<4x128xf32> to vector<1x1x4x128xf32>
    %69 = arith.addf %66, %68 : vector<1x1x4x128xf32>
    %c0_36 = arith.constant 0 : index
    %c0_37 = arith.constant 0 : index
    %c0_38 = arith.constant 0 : index
    %c0_39 = arith.constant 0 : index
    %70 = vector.load %arg5[%c0_36, %c0_37, %c0_38, %c0_39] : memref<1x1x4x128xf32, #tpu.memory_space<vmem>>, vector<1x1x4x128xf32>
    tpu.vector_store %arg5[%c0_36, %c0_37, %c0_38, %c0_39], %69 {strides = array<i32>} : memref<1x1x4x128xf32, #tpu.memory_space<vmem>>, vector<1x1x4x128xf32>,
    %c0_40 = arith.constant 0 : index
    %c0_41 = arith.constant 0 : index
    %c0_42 = arith.constant 0 : index
    %c0_43 = arith.constant 0 : index
    %71 = vector.load %arg6[%c0_40, %c0_41, %c0_42, %c0_43] : memref<1x1x4x128xf32, #tpu.memory_space<vmem>>, vector<1x1x4x128xf32>
    %72 = tpu.concatenate %16, %31, %46, %61 in 0 : vector<1x128xf32>, vector<1x128xf32>, vector<1x128xf32>, vector<1x128xf32> -> vector<4x128xf32>
    %73 = vector.shape_cast %72 : vector<4x128xf32> to vector<1x1x4x128xf32>
    %74 = arith.addf %71, %73 : vector<1x1x4x128xf32>
    %c0_44 = arith.constant 0 : index
    %c0_45 = arith.constant 0 : index
    %c0_46 = arith.constant 0 : index
    %c0_47 = arith.constant 0 : index
    %75 = vector.load %arg6[%c0_44, %c0_45, %c0_46, %c0_47] : memref<1x1x4x128xf32, #tpu.memory_space<vmem>>, vector<1x1x4x128xf32>
    tpu.vector_store %arg6[%c0_44, %c0_45, %c0_46, %c0_47], %74 {strides = array<i32>} : memref<1x1x4x128xf32, #tpu.memory_space<vmem>>, vector<1x1x4x128xf32>,
    %c0_48 = arith.constant 0 : index
    %c0_49 = arith.constant 0 : index
    %c0_50 = arith.constant 0 : index
    %c0_51 = arith.constant 0 : index
    %76 = vector.load %arg7[%c0_48, %c0_49, %c0_50, %c0_51] : memref<1x1x4x128xf32, #tpu.memory_space<vmem>>, vector<1x1x4x128xf32>
    %77 = tpu.concatenate %20, %35, %50, %65 in 0 : vector<1x128xf32>, vector<1x128xf32>, vector<1x128xf32>, vector<1x128xf32> -> vector<4x128xf32>
    %78 = vector.shape_cast %77 : vector<4x128xf32> to vector<1x1x4x128xf32>
    %79 = arith.addf %76, %78 : vector<1x1x4x128xf32>
    %c0_52 = arith.constant 0 : index
    %c0_53 = arith.constant 0 : index
    %c0_54 = arith.constant 0 : index
    %c0_55 = arith.constant 0 : index
    %80 = vector.load %arg7[%c0_52, %c0_53, %c0_54, %c0_55] : memref<1x1x4x128xf32, #tpu.memory_space<vmem>>, vector<1x1x4x128xf32>
    tpu.vector_store %arg7[%c0_52, %c0_53, %c0_54, %c0_55], %79 {strides = array<i32>} : memref<1x1x4x128xf32, #tpu.memory_space<vmem>>, vector<1x1x4x128xf32>,
    return
  }
  func.func @transform_0(%arg0: i32, %arg1: i32, %arg2: i32) -> (i32, i32, i32, i32) {
    %c1_i32 = arith.constant 1 : i32
    %0 = arith.muli %arg1, %c1_i32 : i32
    %1 = arith.addi %0, %arg2 : i32
    %c0_i32 = arith.constant 0 : i32
    %c0_i32_0 = arith.constant 0 : i32
    %c0_i32_1 = arith.constant 0 : i32
    return %arg0, %c0_i32, %1, %c0_i32_0 : i32, i32, i32, i32
  }
  func.func @transform_1(%arg0: i32, %arg1: i32, %arg2: i32) -> (i32, i32, i32) {
    %c1_i32 = arith.constant 1 : i32
    %0 = arith.muli %arg1, %c1_i32 : i32
    %1 = arith.addi %0, %arg2 : i32
    %c0_i32 = arith.constant 0 : i32
    %c0_i32_0 = arith.constant 0 : i32
    return %arg0, %1, %c0_i32 : i32, i32, i32
  }
  func.func @transform_2(%arg0: i32, %arg1: i32, %arg2: i32) -> (i32, i32, i32, i32) {
    %c0_i32 = arith.constant 0 : i32
    %c0_i32_0 = arith.constant 0 : i32
    %c0_i32_1 = arith.constant 0 : i32
    return %arg0, %arg1, %c0_i32, %c0_i32_0 : i32, i32, i32, i32
  }
  func.func @transform_3(%arg0: i32, %arg1: i32, %arg2: i32) -> (i32, i32, i32, i32) {
    %c0_i32 = arith.constant 0 : i32
    %c0_i32_0 = arith.constant 0 : i32
    %c0_i32_1 = arith.constant 0 : i32
    return %arg0, %arg1, %c0_i32, %c0_i32_0 : i32, i32, i32, i32
  }
  func.func @transform_4(%arg0: i32, %arg1: i32, %arg2: i32) -> (i32, i32, i32, i32) {
    %c0_i32 = arith.constant 0 : i32
    %c0_i32_0 = arith.constant 0 : i32
    %c0_i32_1 = arith.constant 0 : i32
    return %arg0, %arg1, %c0_i32, %c0_i32_0 : i32, i32, i32, i32
  }
}

</mosaic_0001>

<llo_original>
// kernel: tpu_custom_call.1
$region0: #{tpu_custom_call.1}
  #allocation0 [shape = 'u32[]', space=smem, size = 0x4, offset = 0x4, fixed_abs, tag = 'smem constant byte address 0x4 - core index']
  #allocation1 [shape = 'u32[144,128]{1,0:T(1,128)}', space=vmem, size = 0x12000, scoped, tag = 'internal scratch']
  %s0 = inlined_call_operand.hbm [shape: f32[2,4,2,128], index: 0, kind: input, shape index: {}]
  %s1 = inlined_call_operand.vmem [shape: s8[2,2,128], index: 1, kind: input, shape index: {}]
  %s2 = inlined_call_operand.hbm [shape: f32[2,1,4,128], index: 2, kind: output, shape index: {0}]
  %s3 = inlined_call_operand.hbm [shape: f32[2,1,4,128], index: 3, kind: output, shape index: {1}]
  %s4 = inlined_call_operand.hbm [shape: f32[2,1,4,128], index: 4, kind: output, shape index: {2}]
  %5 = xla_tuple %s2, %s3, %s4
  %s6 = sld [smem:[#allocation0]]
  $region65: #{tpu_custom_call.1} parent=0
    _
  %s8 = ssub.s32 1, %s6
  %s9 = scalar_select 0, %s8, %s6
  $region1: #{tpu_custom_call.1} parent=0
    #allocation2 [shape = 'u8[8192]{0}', space=vmem, size = 0x2000, scoped, tag = 'input window, operand 0']
    #allocation3 [shape = 's32[2]{0}', space=sflag, size = 0x8, scoped, tag = 'scoped memory for tpu_custom_call.1']
    #allocation4 [shape = 's32[2]{0}', space=sflag, size = 0x8, scoped, tag = 'scoped memory for tpu_custom_call.1']
    #allocation5 [shape = 'u8[4096]{0}', space=vmem, size = 0x1000, scoped, tag = 'output window, operand 0']
    #allocation6 [shape = 'u8[4096]{0}', space=vmem, size = 0x1000, scoped, tag = 'output window, operand 1']
    #allocation7 [shape = 's32[2]{0}', space=sflag, size = 0x8, scoped, tag = 'scoped memory for tpu_custom_call.1']
    #allocation8 [shape = 'u8[4096]{0}', space=vmem, size = 0x1000, scoped, tag = 'output window, operand 2']
    %10 = vsyncpa [#allocation3], 0
    %s11 = scalar_lea.sflag [#allocation3], 1
    %12 = vsyncpa %s11, 0
    %13 = vsyncpa [#allocation4], 0
    %s14 = scalar_lea.sflag [#allocation4], 1
    %15 = vsyncpa %s14, 0
    %16 = vsyncpa [#allocation7], 0
    %s17 = scalar_lea.sflag [#allocation7], 1
    %18 = vsyncpa %s17, 0
    loop: start=0, step=1, limit=4
    $region2: #{tpu_custom_call.1} parent=1 // loop_pre_header
      _
    $region3: #{tpu_custom_call.1} parent=1 // loop_header
      %s20 = sphi 0, %s24
      %p21 = scmp.ge.s32.totalorder %s20, 4
      %s27 = sphi 0, %s46
      %s28 = sphi 0, %s42
      %s29 = sphi 0, %s38
      %s30 = sphi 0, %s27
      %s31 = sphi 0, %s28
      %s32 = sphi 0, %s29
      %s33 = sphi 0, %s30
      %s34 = sphi 0, %s31
      %s35 = sphi 0, %s32
      %s53 = sphi 0, %s55
      %s56 = sphi 0, %s53
      %s57 = sphi 0, %s56
      %s73 = sphi 0, %s57
      %s83 = sphi 0, %s85
      %s86 = sphi 0, %s83
      %s87 = sphi 0, %s86
      %s103 = sphi 0, %s87
      %s111 = sphi 0, %s113
      %s114 = sphi 0, %s111
      %s115 = sphi 0, %s114
      %s131 = sphi 0, %s115
      %s139 = sphi 0, %s141
      %s142 = sphi 0, %s139
      %s143 = sphi 0, %s142
      %s159 = sphi 0, %s143
      %s167 = sphi 0, %s169
      %s170 = sphi 0, %s167
      %s171 = sphi 0, %s170
      %s187 = sphi 0, %s171
    $region4: #{tpu_custom_call.1} parent=1 // loop_header_branch
      %23 = sbr.rel (%p21) target = $region8
    $region5: #{tpu_custom_call.1} parent=1 // loop_body
      %s25 = ssub.s32 %s20, 1
      %s26 = ssub.s32 %s20, 2
      %s36 = sadd.s32 1, %s29
      %p37 = scmp.ge.s32.totalorder %s36, 1
      %s38 = scalar_select %p37, 0, %s36
      %s39 = sadd.s32 1, %s28
      %s40 = scalar_select %p37, %s39, %s28
      %p41 = scmp.ge.s32.totalorder %s40, 1
      %s42 = scalar_select %p41, 0, %s40
      %s43 = sadd.s32 1, %s27
      %s44 = scalar_select %p41, %s43, %s27
      %p45 = scmp.ge.s32.totalorder %s44, 2
      %s46 = scalar_select %p45, 0, %s44
      %s47 = sadd.s32 %s28, %s29
      %s48 = sadd.s32 %s42, %s38
      %s49 = ssub.s32 %s27, %s46
      %s50 = ssub.s32 %s47, %s48
      %s51 = sor.u32 %s49, %s50
      %p52 = scmp.eq.s32.totalorder %s51, 0
      %s54 = sadd.s32 %s53, 1
      %s55 = scalar_select %p52, %s53, %s54
      %p58 = pneg %p52
      %p59 = scmp.eq.s32.totalorder %s20, 1
      %p60 = por %p58, %p59
      %p61 = scmp.ne.s32.totalorder %s53, %s56
      %p62 = scmp.eq.s32.totalorder %s20, 0
      %p63 = por %p61, %p62
      %p64 = scmp.ne.s32.totalorder %s53, %s56
      %p65 = scmp.eq.s32.totalorder %s25, 1
      %p66 = por %p64, %p65
      %p67 = scmp.ne.s32.totalorder %s56, %s57
      %p68 = scmp.eq.s32.totalorder %s25, 0
      %p69 = por %p67, %p68
      %p70 = scmp.ne.s32.totalorder %s56, %s57
      %p71 = scmp.eq.s32.totalorder %s26, 1
      %p72 = por %p70, %p71
      %p74 = scmp.ne.s32.totalorder %s57, %s73
      %p75 = scmp.eq.s32.totalorder %s26, 0
      %p76 = por %p74, %p75
      %s77 = sadd.s32 %s28, %s29
      %s78 = sadd.s32 %s42, %s38
      %s79 = ssub.s32 %s27, %s46
      %s80 = ssub.s32 %s77, %s78
      %s81 = sor.u32 %s79, %s80
      %p82 = scmp.eq.s32.totalorder %s81, 0
      %s84 = sadd.s32 %s83, 1
      %s85 = scalar_select %p82, %s83, %s84
      %p88 = pneg %p82
      %p89 = scmp.eq.s32.totalorder %s20, 1
      %p90 = por %p88, %p89
      %p91 = scmp.ne.s32.totalorder %s83, %s86
      %p92 = scmp.eq.s32.totalorder %s20, 0
      %p93 = por %p91, %p92
      %p94 = scmp.ne.s32.totalorder %s83, %s86
      %p95 = scmp.eq.s32.totalorder %s25, 1
      %p96 = por %p94, %p95
      %p97 = scmp.ne.s32.totalorder %s86, %s87
      %p98 = scmp.eq.s32.totalorder %s25, 0
      %p99 = por %p97, %p98
      %p100 = scmp.ne.s32.totalorder %s86, %s87
      %p101 = scmp.eq.s32.totalorder %s26, 1
      %p102 = por %p100, %p101
      %p104 = scmp.ne.s32.totalorder %s87, %s103
      %p105 = scmp.eq.s32.totalorder %s26, 0
      %p106 = por %p104, %p105
      %s107 = ssub.s32 %s27, %s46
      %s108 = ssub.s32 %s28, %s42
      %s109 = sor.u32 %s107, %s108
      %p110 = scmp.eq.s32.totalorder %s109, 0
      %s112 = sadd.s32 %s111, 1
      %s113 = scalar_select %p110, %s111, %s112
      %p116 = pneg %p110
      %p117 = scmp.eq.s32.totalorder %s20, 1
      %p118 = por %p116, %p117
      %p119 = scmp.ne.s32.totalorder %s111, %s114
      %p120 = scmp.eq.s32.totalorder %s20, 0
      %p121 = por %p119, %p120
      %p122 = scmp.ne.s32.totalorder %s111, %s114
      %p123 = scmp.eq.s32.totalorder %s25, 1
      %p124 = por %p122, %p123
      %p125 = scmp.ne.s32.totalorder %s114, %s115
      %p126 = scmp.eq.s32.totalorder %s25, 0
      %p127 = por %p125, %p126
      %p128 = scmp.ne.s32.totalorder %s114, %s115
      %p129 = scmp.eq.s32.totalorder %s26, 1
      %p130 = por %p128, %p129
      %p132 = scmp.ne.s32.totalorder %s115, %s131
      %p133 = scmp.eq.s32.totalorder %s26, 0
      %p134 = por %p132, %p133
      %s135 = ssub.s32 %s27, %s46
      %s136 = ssub.s32 %s28, %s42
      %s137 = sor.u32 %s135, %s136
      %p138 = scmp.eq.s32.totalorder %s137, 0
      %s140 = sadd.s32 %s139, 1
      %s141 = scalar_select %p138, %s139, %s140
      %p144 = pneg %p138
      %p145 = scmp.eq.s32.totalorder %s20, 1
      %p146 = por %p144, %p145
      %p147 = scmp.ne.s32.totalorder %s139, %s142
      %p148 = scmp.eq.s32.totalorder %s20, 0
      %p149 = por %p147, %p148
      %p150 = scmp.ne.s32.totalorder %s139, %s142
      %p151 = scmp.eq.s32.totalorder %s25, 1
      %p152 = por %p150, %p151
      %p153 = scmp.ne.s32.totalorder %s142, %s143
      %p154 = scmp.eq.s32.totalorder %s25, 0
      %p155 = por %p153, %p154
      %p156 = scmp.ne.s32.totalorder %s142, %s143
      %p157 = scmp.eq.s32.totalorder %s26, 1
      %p158 = por %p156, %p157
      %p160 = scmp.ne.s32.totalorder %s143, %s159
      %p161 = scmp.eq.s32.totalorder %s26, 0
      %p162 = por %p160, %p161
      %s163 = ssub.s32 %s27, %s46
      %s164 = ssub.s32 %s28, %s42
      %s165 = sor.u32 %s163, %s164
      %p166 = scmp.eq.s32.totalorder %s165, 0
      %s168 = sadd.s32 %s167, 1
      %s169 = scalar_select %p166, %s167, %s168
      %p172 = pneg %p166
      %p173 = scmp.eq.s32.totalorder %s20, 1
      %p174 = por %p172, %p173
      %p175 = scmp.ne.s32.totalorder %s167, %s170
      %p176 = scmp.eq.s32.totalorder %s20, 0
      %p177 = por %p175, %p176
      %p178 = scmp.ne.s32.totalorder %s167, %s170
      %p179 = scmp.eq.s32.totalorder %s25, 1
      %p180 = por %p178, %p179
      %p181 = scmp.ne.s32.totalorder %s170, %s171
      %p182 = scmp.eq.s32.totalorder %s25, 0
      %p183 = por %p181, %p182
      %p184 = scmp.ne.s32.totalorder %s170, %s171
      %p185 = scmp.eq.s32.totalorder %s26, 1
      %p186 = por %p184, %p185
      %p188 = scmp.ne.s32.totalorder %s171, %s187
      %p189 = scmp.eq.s32.totalorder %s26, 0
      %p190 = por %p188, %p189
      %p191 = scmp.le.s32.totalorder 1, %s20
      %p192 = scmp.lt.s32.totalorder %s20, 3
      %p193 = pnand %p191, %p192
      %p194 = pneg %p193
      // Predicated region
      $region9: #{tpu_custom_call.1} parent=5 // pred_check
        _
      $region10: #{tpu_custom_call.1} parent=5 // pred_check_branch
        %196 = sbr.rel (%p193) target = $region12
      $region11: #{tpu_custom_call.1} parent=5 // pred_region
        %s197 = ssub.s32 %s20, 1
      $region12: #{tpu_custom_call.1} parent=5 // pred_fallthru
        _
      %p198 = scmp.lt.s32.totalorder %s20, 2
      // Predicated region
      $region13: #{tpu_custom_call.1} parent=5 // pred_check
        %p199 = pneg %p198
      $region14: #{tpu_custom_call.1} parent=5 // pred_check_branch
        %201 = sbr.rel (%p199) target = $region16
      $region15: #{tpu_custom_call.1} parent=5 // pred_region
        // Predicated region
        $region17: #{tpu_custom_call.1} parent=15 // pred_check
          %p202 = pneg %p63
        $region18: #{tpu_custom_call.1} parent=15 // pred_check_branch
          %204 = sbr.rel (%p202) target = $region20
        $region19: #{tpu_custom_call.1} parent=15 // pred_region
          %s205 = sand.u32 %s53, 1
          %s206 = scalar_lea.sflag [#allocation3], %s205
          %s207 = sand.u32 %s53, 1
          %s208 = smul.addr %s207, 8
          %s209 = scalar_lea.vmem [#allocation2], %s208
          %s210 = sadd.s32 %s28, %s29
          %s212 = ssub.s32 128, 128
          %213 = vsyncadd %s206, %s212
          %s214 = smul.addr %s27, 4
          %s215 = sadd.s32 %s210, %s214
          %s216 = smul.addr %s215, 32
          %s217 = scalar_lea.hbm %s0, %s216
          %s218 = sshll.u32 %s209, 4
          %s219 = int_to_ptr.vmem [resolvable:$true] %s218
          %224 = dma.hbm_to_vmem [thread:$0]  %s217, 128, %s219, %s206, 32, 32, 2
        $region20: #{tpu_custom_call.1} parent=15 // pred_fallthru
          _
        // Predicated region
        $region21: #{tpu_custom_call.1} parent=15 // pred_check
          %p225 = pneg %p93
        $region22: #{tpu_custom_call.1} parent=15 // pred_check_branch
          %227 = sbr.rel (%p225) target = $region24
        $region23: #{tpu_custom_call.1} parent=15 // pred_region
          %s228 = sadd.s32 %s28, %s29
          %p229 = scmp.lt.s32.totalorder %s27, 1
          %s230 = scalar_select %p229, %s27, 1
          %p231 = scmp.lt.s32.totalorder %s228, 0
          %s232 = scalar_select %p231, %s228, 0
          %s233 = sadd.s32 %s232, %s230
          %s234 = scalar_lea.vmem %s1, %s233
          %s235 = sadd.s32 %s28, %s29
        $region24: #{tpu_custom_call.1} parent=15 // pred_fallthru
          _
      $region16: #{tpu_custom_call.1} parent=5 // pred_fallthru
        _
      %p236 = scmp.le.s32.totalorder 1, %s20
      %p237 = scmp.lt.s32.totalorder %s20, 3
      %p238 = pnand %p236, %p237
      %p239 = pneg %p238
      // Predicated region
      $region25: #{tpu_custom_call.1} parent=5 // pred_check
        _
      $region26: #{tpu_custom_call.1} parent=5 // pred_check_branch
        %241 = sbr.rel (%p238) target = $region28
      $region27: #{tpu_custom_call.1} parent=5 // pred_region
        %s242 = ssub.s32 %s20, 1
        %s243 = sand.u32 %s56, 1
        %s244 = scalar_lea.sflag [#allocation3], %s243
        %s245 = sand.u32 %s56, 1
        %s246 = smul.addr %s245, 8
        %s247 = scalar_lea.vmem [#allocation2], %s246
        // Predicated region
        $region29: #{tpu_custom_call.1} parent=27 // pred_check
          %p248 = pneg %p69
        $region30: #{tpu_custom_call.1} parent=27 // pred_check_branch
          %250 = sbr.rel (%p248) target = $region32
        $region31: #{tpu_custom_call.1} parent=27 // pred_region
          %251 = dma.done %s244, 128
        $region32: #{tpu_custom_call.1} parent=27 // pred_fallthru
          _
        %s252 = sand.u32 %s56, 1
        %s253 = scalar_lea.sflag [#allocation3], %s252
        %s254 = sand.u32 %s56, 1
        %s255 = smul.addr %s254, 8
        %s256 = scalar_lea.vmem [#allocation2], %s255
        %p257 = pneg %p69
        %p258 = pneg %p66
        %s259 = sadd.s32 %s31, %s32
        %p260 = scmp.lt.s32.totalorder %s30, 1
        %s261 = scalar_select %p260, %s30, 1
        %p262 = scmp.lt.s32.totalorder %s259, 0
        %s263 = scalar_select %p262, %s259, 0
        %s264 = sadd.s32 %s263, %s261
        %s265 = scalar_lea.vmem %s1, %s264
        %p266 = pneg %p99
        %p267 = pneg %p96
        %p268 = pneg %p127
        %p269 = pneg %p124
        %s270 = sand.u32 %s114, 1
        %s271 = scalar_lea.sflag [#allocation4], %s270
        %s272 = sand.u32 %s114, 1
        %s273 = smul.addr %s272, 4
        %s274 = scalar_lea.vmem [#allocation5], %s273
        %p275 = pneg %p155
        %p276 = pneg %p152
        %s277 = sand.u32 %s25, 1
        %s278 = scalar_lea.sflag [#allocation7], %s277
        %s279 = sand.u32 %s142, 1
        %s280 = smul.addr %s279, 4
        %s281 = scalar_lea.vmem [#allocation6], %s280
        %p282 = pneg %p183
        %p283 = pneg %p180
        %s284 = sand.u32 %s25, 1
        %s285 = scalar_lea.sflag [#allocation7], %s284
        %s286 = sand.u32 %s170, 1
        %s287 = smul.addr %s286, 4
        %s288 = scalar_lea.vmem [#allocation8], %s287
        %s289 = sadd.s32 %s31, %s32
        %s290 = sadd.s32 %s31, %s32
        %p291 = scmp.lt.s32.totalorder %s30, 1
        %s292 = scalar_select %p291, %s30, 1
        %p293 = scmp.lt.s32.totalorder %s290, 0
        %s294 = scalar_select %p293, %s290, 0
        %s295 = sadd.s32 %s294, %s292
        %s296 = scalar_lea.vmem %s1, %s295
        %s297 = sadd.s32 %s31, %s32
        %p298 = scmp.eq.s32.totalorder %s32, 0
        // Predicated region
        $region33: #{tpu_custom_call.1} parent=27 // pred_check
          %p299 = pneg %p298
        $region34: #{tpu_custom_call.1} parent=27 // pred_check_branch
          %301 = sbr.rel (%p299) target = $region36
        $region35: #{tpu_custom_call.1} parent=27 // pred_region
          %302 = vst [vmem:[%s274] sm:$0xf] 0.0
          %303 = vst [vmem:[%s281] sm:$0xf] 0.0
          %304 = vst [vmem:[%s288] sm:$0xf] 0.0
        $region36: #{tpu_custom_call.1} parent=27 // pred_fallthru
          _
        %v305 = vld [vmem:[%s296] sm:$0x1]
        %v306 = vunpack.c.0.s8 %v305
        %v307 = vld [vmem:[%s247] sm:$0x3]
        %vm308 = vcmp.eq.s32.totalorder %v306, 0
        %v309 = vsel %vm308, %v307, 0.0
        %vm310 = vcmask 1041408
        %v311 = vsel %vm310, %v309, 0.0
        %v312 = vrot.slane %v311, 4
        %v313 = vadd.f32 %v311, %v312
        %v314 = vrot.slane %v313, 2
        %v315 = vadd.f32 %v313, %v314
        %v316 = vrot.slane %v315, 1
        %v317 = vadd.f32 %v315, %v316
        %v318 = vmul.f32 %v307, %v307
        %v319 = vsel %vm310, %v318, 0.0
        %v320 = vrot.slane %v319, 4
        %v321 = vadd.f32 %v319, %v320
        %v322 = vrot.slane %v321, 2
        %v323 = vadd.f32 %v321, %v322
        %v324 = vrot.slane %v323, 1
        %v325 = vadd.f32 %v323, %v324
        %v326 = vsel %vm308, 1, 0
        %v327 = vcvt.s32.f32 %v326
        %v328 = vsel %vm310, %v327, 0.0
        %v329 = vrot.slane %v328, 4
        %v330 = vadd.f32 %v328, %v329
        %v331 = vrot.slane %v330, 2
        %v332 = vadd.f32 %v330, %v331
        %v333 = vrot.slane %v332, 1
        %v334 = vadd.f32 %v332, %v333
        %s335 = scalar_lea.vmem %s247, 2 [#allocation2]
        %v336 = vld [vmem:[%s335] sm:$0x3]
        %vm337 = vcmp.eq.s32.totalorder %v306, 1
        %v338 = vsel %vm337, %v336, 0.0
        %v339 = vsel %vm310, %v338, 0.0
        %v340 = vrot.slane %v339, 4
        %v341 = vadd.f32 %v339, %v340
        %v342 = vrot.slane %v341, 2
        %v343 = vadd.f32 %v341, %v342
        %v344 = vrot.slane %v343, 1
        %v345 = vadd.f32 %v343, %v344
        %v346 = vmul.f32 %v336, %v336
        %v347 = vsel %vm310, %v346, 0.0
        %v348 = vrot.slane %v347, 4
        %v349 = vadd.f32 %v347, %v348
        %v350 = vrot.slane %v349, 2
        %v351 = vadd.f32 %v349, %v350
        %v352 = vrot.slane %v351, 1
        %v353 = vadd.f32 %v351, %v352
        %v354 = vsel %vm337, 1, 0
        %v355 = vcvt.s32.f32 %v354
        %v356 = vsel %vm310, %v355, 0.0
        %v357 = vrot.slane %v356, 4
        %v358 = vadd.f32 %v356, %v357
        %v359 = vrot.slane %v358, 2
        %v360 = vadd.f32 %v358, %v359
        %v361 = vrot.slane %v360, 1
        %v362 = vadd.f32 %v360, %v361
        %s363 = scalar_lea.vmem %s247, 4 [#allocation2]
        %v364 = vld [vmem:[%s363] sm:$0x3]
        %vm365 = vcmp.eq.s32.totalorder %v306, 2
        %v366 = vsel %vm365, %v364, 0.0
        %v367 = vsel %vm310, %v366, 0.0
        %v368 = vrot.slane %v367, 4
        %v369 = vadd.f32 %v367, %v368
        %v370 = vrot.slane %v369, 2
        %v371 = vadd.f32 %v369, %v370
        %v372 = vrot.slane %v371, 1
        %v373 = vadd.f32 %v371, %v372
        %v374 = vmul.f32 %v364, %v364
        %v375 = vsel %vm310, %v374, 0.0
        %v376 = vrot.slane %v375, 4
        %v377 = vadd.f32 %v375, %v376
        %v378 = vrot.slane %v377, 2
        %v379 = vadd.f32 %v377, %v378
        %v380 = vrot.slane %v379, 1
        %v381 = vadd.f32 %v379, %v380
        %v382 = vsel %vm365, 1, 0
        %v383 = vcvt.s32.f32 %v382
        %v384 = vsel %vm310, %v383, 0.0
        %v385 = vrot.slane %v384, 4
        %v386 = vadd.f32 %v384, %v385
        %v387 = vrot.slane %v386, 2
        %v388 = vadd.f32 %v386, %v387
        %v389 = vrot.slane %v388, 1
        %v390 = vadd.f32 %v388, %v389
        %s391 = scalar_lea.vmem %s247, 6 [#allocation2]
        %v392 = vld [vmem:[%s391] sm:$0x3]
        %vm393 = vcmp.eq.s32.totalorder %v306, 3
        %v394 = vsel %vm393, %v392, 0.0
        %v395 = vsel %vm310, %v394, 0.0
        %v396 = vrot.slane %v395, 4
        %v397 = vadd.f32 %v395, %v396
        %v398 = vrot.slane %v397, 2
        %v399 = vadd.f32 %v397, %v398
        %v400 = vrot.slane %v399, 1
        %v401 = vadd.f32 %v399, %v400
        %v402 = vmul.f32 %v392, %v392
        %v403 = vsel %vm310, %v402, 0.0
        %v404 = vrot.slane %v403, 4
        %v405 = vadd.f32 %v403, %v404
        %v406 = vrot.slane %v405, 2
        %v407 = vadd.f32 %v405, %v406
        %v408 = vrot.slane %v407, 1
        %v409 = vadd.f32 %v407, %v408
        %v410 = vsel %vm393, 1, 0
        %v411 = vcvt.s32.f32 %v410
        %v412 = vsel %vm310, %v411, 0.0
        %v413 = vrot.slane %v412, 4
        %v414 = vadd.f32 %v412, %v413
        %v415 = vrot.slane %v414, 2
        %v416 = vadd.f32 %v414, %v415
        %v417 = vrot.slane %v416, 1
        %v418 = vadd.f32 %v416, %v417
        %v419 = vld [vmem:[%s274] sm:$0xf]
        %vm420 = vcmask 1040384
        %v421 = vsel %vm420, %v317, %v345
        %v422 = vsel %vm310, %v421, %v373
        %vm423 = vcmask 1042432
        %v424 = vsel %vm423, %v422, %v401
        %v425 = vadd.f32 %v419, %v424
        %426 = vst [vmem:[%s274] sm:$0xf] %v425
        %v427 = vld [vmem:[%s281] sm:$0xf]
        %v428 = vsel %vm420, %v325, %v353
        %v429 = vsel %vm310, %v428, %v381
        %v430 = vsel %vm423, %v429, %v409
        %v431 = vadd.f32 %v427, %v430
        %432 = vst [vmem:[%s281] sm:$0xf] %v431
        %v433 = vld [vmem:[%s288] sm:$0xf]
        %v434 = vsel %vm420, %v334, %v362
        %v435 = vsel %vm310, %v434, %v390
        %v436 = vsel %vm423, %v435, %v418
        %v437 = vadd.f32 %v433, %v436
        %438 = vst [vmem:[%s288] sm:$0xf] %v437
        %s439 = sand.u32 %s114, 1
        %s440 = scalar_lea.sflag [#allocation4], %s439
        %s441 = sand.u32 %s114, 1
        %s442 = smul.addr %s441, 4
        %s443 = scalar_lea.vmem [#allocation5], %s442
        %s444 = sand.u32 %s25, 1
        %s445 = scalar_lea.sflag [#allocation7], %s444
        %s446 = sand.u32 %s142, 1
        %s447 = smul.addr %s446, 4
        %s448 = scalar_lea.vmem [#allocation6], %s447
        %s449 = sand.u32 %s25, 1
        %s450 = scalar_lea.sflag [#allocation7], %s449
        %s451 = sand.u32 %s170, 1
        %s452 = smul.addr %s451, 4
        %s453 = scalar_lea.vmem [#allocation8], %s452
        // Predicated region
        $region37: #{tpu_custom_call.1} parent=27 // pred_check
          %p454 = pneg %p124
        $region38: #{tpu_custom_call.1} parent=27 // pred_check_branch
          %456 = sbr.rel (%p454) target = $region40
        $region39: #{tpu_custom_call.1} parent=27 // pred_region
          %s458 = ssub.s32 64, 64
          %459 = vsyncadd %s440, %s458
          %s460 = sadd.s32 %s31, %s30
          %s461 = smul.addr %s460, 64
          %s462 = scalar_lea.hbm %s2, %s461
          %s464 = sshll.u32 %s443, 4
          %s465 = int_to_ptr.vmem [resolvable:$true] %s464
          %467 = dma.vmem_to_hbm [thread:$0]  %s465, 64, %s462, %s440
        $region40: #{tpu_custom_call.1} parent=27 // pred_fallthru
          _
        // Predicated region
        $region41: #{tpu_custom_call.1} parent=27 // pred_check
          %p468 = pneg %p152
        $region42: #{tpu_custom_call.1} parent=27 // pred_check_branch
          %470 = sbr.rel (%p468) target = $region44
        $region43: #{tpu_custom_call.1} parent=27 // pred_region
          %s472 = ssub.s32 64, 64
          %473 = vsyncadd %s445, %s472
          %s474 = sadd.s32 %s31, %s30
          %s475 = smul.addr %s474, 64
          %s476 = scalar_lea.hbm %s3, %s475
          %s478 = sshll.u32 %s448, 4
          %s479 = int_to_ptr.vmem [resolvable:$true] %s478
          %481 = dma.vmem_to_hbm [thread:$0]  %s479, 64, %s476, %s445
        $region44: #{tpu_custom_call.1} parent=27 // pred_fallthru
          _
        // Predicated region
        $region45: #{tpu_custom_call.1} parent=27 // pred_check
          %p482 = pneg %p180
        $region46: #{tpu_custom_call.1} parent=27 // pred_check_branch
          %484 = sbr.rel (%p482) target = $region48
        $region47: #{tpu_custom_call.1} parent=27 // pred_region
          %s486 = ssub.s32 64, 64
          %487 = vsyncadd %s450, %s486
          %s488 = sadd.s32 %s31, %s30
          %s489 = smul.addr %s488, 64
          %s490 = scalar_lea.hbm %s4, %s489
          %s492 = sshll.u32 %s453, 4
          %s493 = int_to_ptr.vmem [resolvable:$true] %s492
          %495 = dma.vmem_to_hbm [thread:$0]  %s493, 64, %s490, %s450
        $region48: #{tpu_custom_call.1} parent=27 // pred_fallthru
          _
      $region28: #{tpu_custom_call.1} parent=5 // pred_fallthru
        _
      %p496 = scmp.le.s32.totalorder 2, %s20
      // Predicated region
      $region49: #{tpu_custom_call.1} parent=5 // pred_check
        %p497 = pneg %p496
      $region50: #{tpu_custom_call.1} parent=5 // pred_check_branch
        %499 = sbr.rel (%p497) target = $region52
      $region51: #{tpu_custom_call.1} parent=5 // pred_region
        %s500 = ssub.s32 %s20, 2
        // Predicated region
        $region53: #{tpu_custom_call.1} parent=51 // pred_check
          %p501 = pneg %p130
        $region54: #{tpu_custom_call.1} parent=51 // pred_check_branch
          %503 = sbr.rel (%p501) target = $region56
        $region55: #{tpu_custom_call.1} parent=51 // pred_region
          %s504 = sand.u32 %s115, 1
          %s505 = scalar_lea.sflag [#allocation4], %s504
          %s506 = sand.u32 %s115, 1
          %s507 = smul.addr %s506, 4
          %s508 = scalar_lea.vmem [#allocation5], %s507
          %509 = dma.done %s505, 64
        $region56: #{tpu_custom_call.1} parent=51 // pred_fallthru
          _
        // Predicated region
        $region57: #{tpu_custom_call.1} parent=51 // pred_check
          %p510 = pneg %p158
        $region58: #{tpu_custom_call.1} parent=51 // pred_check_branch
          %512 = sbr.rel (%p510) target = $region60
        $region59: #{tpu_custom_call.1} parent=51 // pred_region
          %s513 = sand.u32 %s26, 1
          %s514 = scalar_lea.sflag [#allocation7], %s513
          %s515 = sand.u32 %s143, 1
          %s516 = smul.addr %s515, 4
          %s517 = scalar_lea.vmem [#allocation6], %s516
          %518 = dma.done %s514, 64
        $region60: #{tpu_custom_call.1} parent=51 // pred_fallthru
          _
        // Predicated region
        $region61: #{tpu_custom_call.1} parent=51 // pred_check
          %p519 = pneg %p186
        $region62: #{tpu_custom_call.1} parent=51 // pred_check_branch
          %521 = sbr.rel (%p519) target = $region64
        $region63: #{tpu_custom_call.1} parent=51 // pred_region
          %s522 = sand.u32 %s26, 1
          %s523 = scalar_lea.sflag [#allocation7], %s522
          %s524 = sand.u32 %s171, 1
          %s525 = smul.addr %s524, 4
          %s526 = scalar_lea.vmem [#allocation8], %s525
          %527 = dma.done %s523, 64
        $region64: #{tpu_custom_call.1} parent=51 // pred_fallthru
          _
      $region52: #{tpu_custom_call.1} parent=5 // pred_fallthru
        _
    $region6: #{tpu_custom_call.1} parent=1 // loop_footer
      %s24 = sadd.s32 1, %s20
    $region7: #{tpu_custom_call.1} parent=1 // loop_footer_branch
      %19 = sbr.rel target = $region3
    $region8: #{tpu_custom_call.1} parent=1 // loop_exit
      _
    %528 = vsyncpa [#allocation3], 1
    %s529 = scalar_lea.sflag [#allocation3], 1
    %530 = vsyncpa %s529, 1
    %531 = vsyncpa [#allocation4], 1
    %s532 = scalar_lea.sflag [#allocation4], 1
    %533 = vsyncpa %s532, 1
    %534 = vsyncpa [#allocation7], 1
    %s535 = scalar_lea.sflag [#allocation7], 1
    %536 = vsyncpa %s535, 1

</llo_original>
